<compile_context>
chip_gen: v5e
topology: v5e:2x2
jax: 0.10.0
libtpu: 0.0.40
codegen_flags: <defaults>
</compile_context>

<pallas_src>
import jax
import jax.numpy as jnp
from jax import lax
from jax.experimental import pallas as pl
from jax.experimental.pallas import tpu as pltpu

_EPS = 1e-8  # matches torch.nn.functional.cosine_similarity default
_MAX_TILE = 32768


def _round_up(v, m):
    return (v + m - 1) // m * m


def _cdiv(a, b):
    return -(-a // b)


def _sublane(dtype):
    return {4: 8, 2: 16, 1: 32}.get(jnp.dtype(dtype).itemsize, 8)


def _vmem_capacity_bytes():
    # Chip-gated VMEM budget: 128 MiB on v5e/v6e, 64 MiB per core on v7x.
    try:
        return int(pltpu.get_tpu_info().vmem_capacity_bytes)
    except Exception:
        return 64 * 1024 * 1024  # conservative default (v7x per-core VMEM)


_VMEM_CAP = _vmem_capacity_bytes()
_BLOCK_BUDGET = min(24 * 1024 * 1024, _VMEM_CAP // 4)
_BASE_VMEM_LIMIT = min(_VMEM_CAP - 8 * 1024 * 1024,
                       _BLOCK_BUDGET + 8 * 1024 * 1024)


def _row_bytes(d, dtype):
    # VMEM footprint of one row: lanes are padded to 128 regardless of D.
    return _round_up(d, 128) * jnp.dtype(dtype).itemsize


def _auto_tile(rows_needed, d, dtype, n_streams):
    """Largest row-tile (multiple of the sublane count) such that `n_streams`
    double-buffered (tile, d) blocks fit the per-chip VMEM block budget."""
    sub = _sublane(dtype)
    cap = _BLOCK_BUDGET // (2 * n_streams * _row_bytes(d, dtype))
    cap = max(sub, cap // sub * sub)
    need = max(sub, _round_up(rows_needed, sub))
    return min(cap, _MAX_TILE, need)


def _vmem_limit(tile, d, dtype, n_streams):
    need = 2 * n_streams * tile * _row_bytes(d, dtype) + (4 << 20)
    return int(min(_VMEM_CAP, max(_BASE_VMEM_LIMIT, need)))


# --------------------------------------------------------------------------
# Kernel 1: row-wise L2 normalization of node features (N rows, tiled).
# --------------------------------------------------------------------------
def _normalize_kernel(x_ref, out_ref):
    xf = x_ref[...].astype(jnp.float32)
    sumsq = jnp.sum(xf * xf, axis=-1, keepdims=True)              # (TILE_N, 1)
    # 1 / max(||x||, eps) == rsqrt(max(sum(x^2), eps^2))  -> EUP, no VPU divide
    inv = lax.rsqrt(jnp.maximum(sumsq, jnp.float32(_EPS * _EPS)))
    out_ref[...] = (xf * inv).astype(out_ref.dtype)


def _normalize_rows_padded(x, n_pad_min, tile_n=None):
    """L2-normalize rows of x, returning >= n_pad_min rows; appended rows are
    all-zero (zero rows normalize to exactly zero -> valid sentinel rows)."""
    n, d = x.shape
    if tile_n is None:
        tile_n = _auto_tile(n_pad_min, d, x.dtype, n_streams=2)
    n_pad = _round_up(max(n_pad_min, n), tile_n)
    if n_pad != n:
        x = jnp.pad(x, ((0, n_pad - n), (0, 0)))
    return pl.pallas_call(
        _normalize_kernel,
        out_shape=jax.ShapeDtypeStruct((n_pad, d), x.dtype),
        grid=(n_pad // tile_n,),
        in_specs=[pl.BlockSpec((tile_n, d), lambda i: (i, 0))],
        out_specs=pl.BlockSpec((tile_n, d), lambda i: (i, 0)),
        compiler_params=pltpu.CompilerParams(
            dimension_semantics=("parallel",),
            vmem_limit_bytes=_vmem_limit(tile_n, d, x.dtype, 2),
        ),
    )(x)


# --------------------------------------------------------------------------
# Kernel 2: per-edge relu(thrd - cos_sim) sum, tiled over edges.
#   Masked / padded edges were redirected to the zero sentinel row, so they
#   contribute exactly relu(thrd); the wrapper corrects for them afterwards.
# --------------------------------------------------------------------------
def _homo_edge_kernel(thrd_ref, xs_ref, xd_ref, sum_ref, acc_sum):
    # thrd_ref : SMEM (1,)        f32  threshold
    # xs_ref   : VMEM (TILE_E, D) x_hat[src]   (pre-normalized)
    # xd_ref   : VMEM (TILE_E, D) x_hat[dst]
    # sum_ref  : VMEM (1, 1)      f32  per-chunk partial sum (written at last step)
    # acc_sum  : VMEM (1, 1)      f32  running accumulator
    i = pl.program_id(1)

    @pl.when(i == 0)
    def _():
        acc_sum[...] = jnp.zeros_like(acc_sum)

    # bf16 inputs: keep the elementwise product in bf16, reduce in f32.
    prod = xs_ref[...] * xd_ref[...]
    sims = jnp.sum(prod.astype(jnp.float32), axis=-1, keepdims=True)  # (TILE_E,1)
    vals = jnp.maximum(thrd_ref[0] - sims, 0.0)
    # Single remaining per-tile reduction (count/mask reductions removed);
    # its ~TILE_E/8 vreg adds are hidden under the tile's DMA time.
    acc_sum[...] += jnp.sum(vals, axis=(0, 1), keepdims=True)

    @pl.when(i == pl.num_programs(1) - 1)
    def _():
        sum_ref[...] = acc_sum[...]


def homo_loss(trigger_edge_index, trigger_edge_weights, x, thrd,
              *, tile_e=None, tile_n=None, num_chunks=None):
    """Pallas-backed equivalent of HomoLoss.forward.

    Note: if no edge has weight > 0 the result is NaN (0/0), matching
    torch.mean of an empty tensor.
    """
    x = jnp.asarray(x)
    n, d = x.shape
    e = int(trigger_edge_index.shape[1])
    if e == 0:
        return jnp.float32(float("nan"))

    w = jnp.asarray(trigger_edge_weights).reshape(-1)
    keep = w > 0.0
    num_kept = jnp.sum(keep.astype(jnp.float32))      # count done wrapper-side

    # 1) normalize node features once; row `n` (first padded row) is the
    #    all-zero sentinel used for dropped / padded edges.
    x_hat = _normalize_rows_padded(x, n + 1, tile_n=tile_n)
    sentinel = n

    # 2) edge tiling (chip-aware VMEM budget, both streams, lane padding).
    if tile_e is None:
        tile_cap = _auto_tile(e, d, x.dtype, n_streams=2)
    else:
        tile_cap = tile_e
    if num_chunks is None:
        # Two chunks feed v7x's two TensorCores; skip for small edge counts.
        num_chunks = 2 if _cdiv(e, tile_cap) >= 2 else 1
    sub = _sublane(x.dtype)
    tile_e = min(tile_cap, max(sub, _round_up(_cdiv(e, num_chunks), sub)))
    tiles_per_chunk = _cdiv(e, num_chunks * tile_e)
    e_pad = num_chunks * tiles_per_chunk * tile_e

    # 3) fold the `w > 0` filter and edge padding into the gather indices.
    src = jnp.asarray(trigger_edge_index[0], dtype=jnp.int32)
    dst = jnp.asarray(trigger_edge_index[1], dtype=jnp.int32)
    src = jnp.where(keep, src, sentinel)
    dst = jnp.where(keep, dst, sentinel)
    if e_pad != e:
        src = jnp.pad(src, (0, e_pad - e), constant_values=sentinel)
        dst = jnp.pad(dst, (0, e_pad - e), constant_values=sentinel)

    # TODO(synk): fuse this gather into the edge kernel (needs a portable
    # in-kernel dynamic row gather over arbitrary N); until then XLA's gather
    # writes/reads the (E, D) endpoint arrays through HBM once.
    xs = jnp.take(x_hat, src, axis=0)                              # (E_pad, D)
    xd = jnp.take(x_hat, dst, axis=0)                              # (E_pad, D)

    thrd_f = jnp.asarray(thrd, dtype=jnp.float32)
    thrd_arr = thrd_f.reshape((1,))

    psum = pl.pallas_call(
        _homo_edge_kernel,
        out_shape=jax.ShapeDtypeStruct((num_chunks, 1), jnp.float32),
        grid=(num_chunks, tiles_per_chunk),
        in_specs=[
            pl.BlockSpec(memory_space=pltpu.SMEM),                  # thrd scalar
            pl.BlockSpec((tile_e, d), lambda c, i: (c * tiles_per_chunk + i, 0)),
            pl.BlockSpec((tile_e, d), lambda c, i: (c * tiles_per_chunk + i, 0)),
        ],
        out_specs=pl.BlockSpec((1, 1), lambda c, i: (c, 0)),
        scratch_shapes=[pltpu.VMEM((1, 1), jnp.float32)],
        compiler_params=pltpu.CompilerParams(
            dimension_semantics=("parallel", "arbitrary"),
            vmem_limit_bytes=_vmem_limit(tile_e, d, x.dtype, 2),
        ),
    )(thrd_arr, xs, xd)

    # Sentinel (dropped + padded) edges contributed relu(thrd - 0) each.
    total = jnp.sum(psum) - (e_pad - num_kept) * jnp.maximum(thrd_f, 0.0)
    return total / num_kept


def _reference(trigger_edge_index, trigger_edge_weights, x, thrd):
    """Pure-JAX reference mirroring the PyTorch forward (masked form)."""
    src = trigger_edge_index[0]
    dst = trigger_edge_index[1]
    xs = x[src].astype(jnp.float32)
    xd = x[dst].astype(jnp.float32)
    eps = 1e-8
    sims = jnp.sum(xs * xd, -1) / (
        jnp.maximum(jnp.linalg.norm(xs, axis=-1), eps)
        * jnp.maximum(jnp.linalg.norm(xd, axis=-1), eps)
    )
    mask = (trigger_edge_weights > 0.0).astype(jnp.float32)
    vals = jnp.maximum(thrd - sims, 0.0) * mask
    return jnp.sum(vals) / jnp.sum(mask)


if __name__ == "__main__":
    key = jax.random.PRNGKey(0)
    k1, k2, k3 = jax.random.split(key, 3)

    num_nodes = 10
    feat_dim = 32
    num_edges = 8
    thrd = 0.5

    x = jax.random.normal(k1, (num_nodes, feat_dim), dtype=jnp.float32)
    trigger_edge_index = jax.random.randint(
        k2, (2, num_edges), minval=0, maxval=num_nodes, dtype=jnp.int32
    )
    # Mix of positive / non-positive weights so the `> 0` filter matters.
    trigger_edge_weights = jax.random.uniform(
        k3, (num_edges,), minval=-0.5, maxval=1.0, dtype=jnp.float32
    )

    loss = homo_loss(trigger_edge_index, trigger_edge_weights, x, thrd)
    loss = jax.block_until_ready(loss)

    ref = _reference(trigger_edge_index, trigger_edge_weights, x, thrd)
    assert jnp.allclose(loss, ref, atol=1e-5, rtol=1e-5), (loss, ref)

    print("KERNEL_OK")
</pallas_src>

<mosaic_0001>
module attributes {stable_mosaic.version = 11 : i64} {
  func.func @_normalize_kernel(%arg0: i32, %arg1: memref<16x32xf32, #tpu.memory_space<vmem>>, %arg2: memref<16x32xf32, #tpu.memory_space<vmem>>) attributes {dimension_semantics = [#tpu.dimension_semantics<parallel>], iteration_bounds = array<i64: 1>, scalar_prefetch = 0 : i64, scratch_operands = 0 : i64, tpu.core_type = #tpu.core_type<tc>, window_params = [{transform_indices = @transform_0, window_bounds = array<i64: 16, 32>}, {transform_indices = @transform_1, window_bounds = array<i64: 16, 32>}]} {
    %c0 = arith.constant 0 : index
    %c0_0 = arith.constant 0 : index
    %0 = vector.load %arg1[%c0, %c0_0] : memref<16x32xf32, #tpu.memory_space<vmem>>, vector<16x32xf32>
    %1 = arith.mulf %0, %0 : vector<16x32xf32>
    %cst = arith.constant dense<0.000000e+00> : vector<16xf32>
    %2 = vector.multi_reduction <add>, %1, %cst [1] : vector<16x32xf32> to vector<16xf32>
    %3 = vector.shape_cast %2 : vector<16xf32> to vector<16x1xf32>
    %cst_1 = arith.constant 1.000000e-16 : f32
    %4 = vector.broadcast %cst_1 : f32 to vector<16x1xf32>
    %5 = arith.maximumf %3, %4 : vector<16x1xf32>
    %6 = math.rsqrt %5 : vector<16x1xf32>
    %7 = vector.broadcast %6 : vector<16x1xf32> to vector<16x32xf32>
    %8 = arith.mulf %0, %7 : vector<16x32xf32>
    %c0_2 = arith.constant 0 : index
    %c0_3 = arith.constant 0 : index
    %9 = vector.load %arg2[%c0_2, %c0_3] : memref<16x32xf32, #tpu.memory_space<vmem>>, vector<16x32xf32>
    tpu.vector_store %arg2[%c0_2, %c0_3], %8 {strides = array<i32>} : memref<16x32xf32, #tpu.memory_space<vmem>>, vector<16x32xf32>,
    return
  }
  func.func @transform_0(%arg0: i32) -> (i32, i32) {
    %c0_i32 = arith.constant 0 : i32
    %c0_i32_0 = arith.constant 0 : i32
    return %arg0, %c0_i32 : i32, i32
  }
  func.func @transform_1(%arg0: i32) -> (i32, i32) {
    %c0_i32 = arith.constant 0 : i32
    %c0_i32_0 = arith.constant 0 : i32
    return %arg0, %c0_i32 : i32, i32
  }
}

</mosaic_0001>

<llo_original>
// kernel: tpu_custom_call.1
$region0: #{tpu_custom_call.1}
  #allocation0 [shape = 'u32[]', space=smem, size = 0x4, offset = 0x4, fixed_abs, tag = 'smem constant byte address 0x4 - core index']
  #allocation1 [shape = 'u32[72,128]{1,0:T(1,128)}', space=vmem, size = 0x9000, scoped, tag = 'internal scratch']
  %s0 = inlined_call_operand.hbm [shape: f32[16,32], index: 0, kind: input, shape index: {}]
  %s1 = inlined_call_operand.hbm [shape: f32[16,32], index: 1, kind: output, shape index: {}]
  %s2 = sld [smem:[#allocation0]]
  $region18: #{tpu_custom_call.1} parent=0
    _
  %s4 = ssub.s32 1, %s2
  %s5 = scalar_select 0, %s4, %s2
  $region1: #{tpu_custom_call.1} parent=0
    #allocation2 [shape = 'u8[8192]{0}', space=vmem, size = 0x2000, scoped, tag = 'input window, operand 0, single buffered']
    #allocation3 [shape = 's32[1]{0}', space=sflag, size = 0x4, scoped, tag = 'scoped memory for tpu_custom_call.1']
    #allocation4 [shape = 's32[1]{0}', space=sflag, size = 0x4, scoped, tag = 'scoped memory for tpu_custom_call.1']
    #allocation5 [shape = 'u8[8192]{0}', space=vmem, size = 0x2000, scoped, tag = 'output window, operand 0, single buffered']
    %6 = vsyncpa [#allocation3], 0
    %7 = vsyncpa [#allocation4], 0
    // Predicated region
    $region2: #{tpu_custom_call.1} parent=1 // pred_check
      _
    $region3: #{tpu_custom_call.1} parent=1 // pred_check_branch
      %9 = sbr.rel (0) target = $region5
    $region4: #{tpu_custom_call.1} parent=1 // pred_region
      %11 = vsyncadd [#allocation3], 0
      %s12 = sshll.u32 %s0, 4
      %s13 = int_to_ptr.hbm [resolvable:$true] %s12
      %s14 = sshll.u32 [#allocation2], 4
      %s15 = int_to_ptr.vmem [resolvable:$true] %s14
      %20 = dma.hbm_to_vmem [thread:$0]  %s13, 256, %s15, [#allocation3], 128, 128, 8
    $region5: #{tpu_custom_call.1} parent=1 // pred_fallthru
      _
    // Predicated region
    $region6: #{tpu_custom_call.1} parent=1 // pred_check
      _
    $region7: #{tpu_custom_call.1} parent=1 // pred_check_branch
      %22 = sbr.rel (0) target = $region9
    $region8: #{tpu_custom_call.1} parent=1 // pred_region
      %24 = dma.done [#allocation3], 256
    $region9: #{tpu_custom_call.1} parent=1 // pred_fallthru
      _
    %v25 = vld [vmem:[#allocation2] sm:$0xff]
    %v26 = vld [vmem:[#allocation2 + $0x8] sm:$0xff]
    %v27 = vmul.f32 %v25, %v25
    %v28 = vmul.f32 %v26, %v26
    %vm29 = vcmask 261120
    %v30 = vsel %vm29, %v27, 0.0
    %31 = vadd.xlane.f32.xlu0 %v30
    %v32 = vpop.xlane.xlu0 %31
    %v33 = vsel %vm29, %v28, 0.0
    %34 = vadd.xlane.f32.xlu0 %v33
    %v35 = vpop.xlane.xlu0 %34
    %v36 = vmax.f32 %v32, 1e-16
    %v37 = vmax.f32 %v35, 1e-16
    %v38 = vrsqrt.pop %v36
    %v39 = vmul.f32 %v38, %v36
    %v40 = vmul.f32 %v39, %v38
    %v41 = vmul.f32 0.5, %v40
    %v42 = vsub.f32 1.5, %v41
    %v43 = vmul.f32 %v38, %v42
    %vm44 = vweird.f32 %v36
    %vm45 = vweird.f32 %v38
    %vm46 = vmor %vm44, %vm45
    %v47 = vsel %vm46, %v38, %v43
    %v48 = vrsqrt.pop %v37
    %v49 = vmul.f32 %v48, %v37
    %v50 = vmul.f32 %v49, %v48
    %v51 = vmul.f32 0.5, %v50
    %v52 = vsub.f32 1.5, %v51
    %v53 = vmul.f32 %v48, %v52
    %vm54 = vweird.f32 %v37
    %vm55 = vweird.f32 %v48
    %vm56 = vmor %vm54, %vm55
    %v57 = vsel %vm56, %v48, %v53
    %v58 = vmul.f32 %v25, %v47
    %v59 = vmul.f32 %v26, %v57
    %60 = vst.msk [vmem:[#allocation5] sm:$0xff] %vm29, %v58
    %61 = vst.msk [vmem:[#allocation5 + $0x8] sm:$0xff] %vm29, %v59
    // Predicated region
    $region10: #{tpu_custom_call.1} parent=1 // pred_check
      _
    $region11: #{tpu_custom_call.1} parent=1 // pred_check_branch
      %63 = sbr.rel (0) target = $region13
    $region12: #{tpu_custom_call.1} parent=1 // pred_region
      %65 = vsyncadd [#allocation4], 0
      %s66 = sshll.u32 [#allocation5], 4
      %s67 = int_to_ptr.vmem [resolvable:$true] %s66
      %s68 = sshll.u32 %s1, 4
      %s69 = int_to_ptr.hbm [resolvable:$true] %s68
      %74 = dma.vmem_to_hbm [thread:$0]  %s67, 256, %s69, [#allocation4], 128, 128, 8
    $region13: #{tpu_custom_call.1} parent=1 // pred_fallthru
      _
    // Predicated region
    $region14: #{tpu_custom_call.1} parent=1 // pred_check
      _
    $region15: #{tpu_custom_call.1} parent=1 // pred_check_branch
      %76 = sbr.rel (0) target = $region17
    $region16: #{tpu_custom_call.1} parent=1 // pred_region
      %78 = dma.done [#allocation4], 256
    $region17: #{tpu_custom_call.1} parent=1 // pred_fallthru
      _
    %79 = vsyncpa [#allocation3], 1
    %80 = vsyncpa [#allocation4], 1

</llo_original>
